<compile_context>
chip_gen: v5e
topology: v5e:2x2
jax: 0.10.0
libtpu: 0.0.40
codegen_flags: <defaults>
</compile_context>

<pallas_src>
import jax
import jax.numpy as jnp
from jax.experimental import pallas as pl
from jax.experimental.pallas import tpu as pltpu

_LANE = 128


def _round_up(n, m):
    return ((n + m - 1) // m) * m


def _self_opt_seq_kernel(x_ref, w1_ref, b1_ref, w2_ref, b2_ref, out_ref):
    """Fused 2-layer MLP + final sigmoid, one batch tile per grid step.

    out_ref is a single lane-dense (batch_tile, 2*Dpad) block:
      lanes [0:Dpad)       -> y_pred  = sigmoid(alpha_L - 1e-6)
      lanes [Dpad:2*Dpad)  -> alpha_L = relu(x@W1 + b1) @ W2 + b2
    """
    x = x_ref[...]

    # Layer 1: alpha_1 = relu(x @ W1 + b1)   (n_l_activated := alpha_1 > 0)
    h = jnp.dot(x, w1_ref[...], preferred_element_type=jnp.float32)
    h = jnp.maximum(h + b1_ref[...], 0.0)

    # Layer 2 (output layer): alpha_L = h @ W2 + b2
    a = jnp.dot(h, w2_ref[...], preferred_element_type=jnp.float32)
    a = a + b2_ref[...]

    dpad = a.shape[-1]                       # static (128)
    out_ref[:, :dpad] = jax.nn.sigmoid(a - 1e-6).astype(out_ref.dtype)
    out_ref[:, dpad:] = a.astype(out_ref.dtype)


@jax.jit
def self_optimizing_sequential_forward(x, w1, b1, w2, b2):
    B, Din = x.shape
    H = w1.shape[1]
    Dout = w2.shape[1]

    # ---- tile geometry (MXU-height batch tiles, lane-dense outputs) ----
    Dpad = _round_up(max(Dout, _LANE), _LANE)          # output lanes -> 128-multiple
    B_pad = _round_up(B, _LANE)                        # batch rows   -> 128-multiple
    if B_pad <= _LANE:
        batch_tile = B_pad                             # toy size: one grid step
    else:
        # >= 2 parallel steps (both v7x TensorCores busy), tiles capped for VMEM.
        batch_tile = min(B_pad // 2, 1024)
        batch_tile = max(_LANE, (batch_tile // _LANE) * _LANE)
        B_pad = _round_up(B_pad, batch_tile)
    grid = (B_pad // batch_tile,)

    # Zero-pad batch rows and output columns (sliced off after the call).
    xp = jnp.pad(x, ((0, B_pad - B), (0, 0)))
    w2p = jnp.pad(w2, ((0, 0), (0, Dpad - Dout)))
    b2p = jnp.pad(b2, ((0, 0), (0, Dpad - Dout)))

    # ---- scheduler hints ----
    flops = 2 * B_pad * (Din * H + H * Dpad)
    bytes_accessed = 4 * (B_pad * Din + Din * H + H + H * Dpad + Dpad
                          + B_pad * 2 * Dpad)
    vmem_need = 4 * (2 * batch_tile * Din              # double-buffered x tiles
                     + 2 * batch_tile * 2 * Dpad       # double-buffered fused output
                     + 2 * (Din * H + H + H * Dpad + Dpad))  # weights / biases
    vmem_limit = int(min(max(2 * vmem_need, 16 << 20), 64 << 20))

    out = pl.pallas_call(
        _self_opt_seq_kernel,
        out_shape=jax.ShapeDtypeStruct((B_pad, 2 * Dpad), jnp.float32),
        grid=grid,
        in_specs=[
            pl.BlockSpec((batch_tile, Din), lambda i: (i, 0)),  # x tile
            pl.BlockSpec((Din, H), lambda i: (0, 0)),           # W1 (full)
            pl.BlockSpec((1, H), lambda i: (0, 0)),             # b1 (full)
            pl.BlockSpec((H, Dpad), lambda i: (0, 0)),          # W2 (padded cols)
            pl.BlockSpec((1, Dpad), lambda i: (0, 0)),          # b2 (padded cols)
        ],
        out_specs=pl.BlockSpec((batch_tile, 2 * Dpad), lambda i: (i, 0)),
        compiler_params=pltpu.CompilerParams(
            dimension_semantics=("parallel",),
            vmem_limit_bytes=vmem_limit),
        cost_estimate=pl.CostEstimate(
            flops=flops,
            transcendentals=B_pad * Dpad,
            bytes_accessed=bytes_accessed),
    )(xp, w1, b1, w2p, b2p)

    y_pred = out[:B, :Dout]
    alpha_L = out[:B, Dpad:Dpad + Dout]
    return y_pred, alpha_L


class SelfOptimizingSequentialPallas:
    """Mirrors the PyTorch module's P()/forward() contract (stateful alpha_L/error)."""

    def __init__(self, w1, b1, w2, b2, lr=0.01):
        self.params = (w1, b1, w2, b2)
        self.lr = lr
        self.alpha_L = None
        self.error = None

    def __call__(self, x, y_label=None):
        # lr_coef exactly as in the reference P(); the concrete custom layers
        # of the original script are undefined, so lr_coef has no consumer in
        # this instantiation.
        # TODO(synk): lower the lr_coef-driven in-layer update (uses each
        # layer's n_l_activated) once the layer definitions are available.
        lr_coef = None
        if self.alpha_L is not None and self.error is not None and y_label is not None:
            lr_coef = self.lr * self.error
            lr_coef = lr_coef / ((1.0 - y_label) * lr_coef + 1.0)
            lr_coef = lr_coef * (1.0 - 2.0 * y_label)

        y_pred, alpha_L = self_optimizing_sequential_forward(x, *self.params)

        # State bookkeeping identical to the reference: set on the first
        # labeled call, consumed at the top of the next labeled call, then
        # cleared (the reference's ternaries reset to None too).
        self.alpha_L = alpha_L if (self.alpha_L is None and y_label is not None) else None
        if self.error is None and y_label is not None:
            eps = 1e-12
            yp = jnp.clip(y_pred, eps, 1.0 - eps)
            self.error = -(y_label * jnp.log(yp) + (1.0 - y_label) * jnp.log(1.0 - yp))
        else:
            self.error = None
        return y_pred, alpha_L


if __name__ == "__main__":
    key = jax.random.PRNGKey(0)
    k_x, k_w1, k_b1, k_w2, k_b2 = jax.random.split(key, 5)

    B, Din, H, Dout = 16, 32, 32, 8

    x = jax.random.normal(k_x, (B, Din), dtype=jnp.float32)
    # Deterministic parameter init (synthetic; no checkpoint loading).
    w1 = jax.random.normal(k_w1, (Din, H), dtype=jnp.float32) * (1.0 / jnp.sqrt(Din))
    b1 = jax.random.normal(k_b1, (1, H), dtype=jnp.float32) * 0.01
    w2 = jax.random.normal(k_w2, (H, Dout), dtype=jnp.float32) * (1.0 / jnp.sqrt(H))
    b2 = jax.random.normal(k_b2, (1, Dout), dtype=jnp.float32) * 0.01

    model = SelfOptimizingSequentialPallas(w1, b1, w2, b2, lr=0.001)
    y_pred, alpha_L = model(x, y_label=None)
    jax.block_until_ready((y_pred, alpha_L))

    # Sanity check against plain-JAX reference of the same math.
    h_ref = jnp.maximum(x @ w1 + b1, 0.0)
    a_ref = h_ref @ w2 + b2
    yp_ref = jax.nn.sigmoid(a_ref - 1e-6)
    assert y_pred.shape == (B, Dout) and alpha_L.shape == (B, Dout)
    assert jnp.allclose(alpha_L, a_ref, atol=1e-5), "alpha_L mismatch"
    assert jnp.allclose(y_pred, yp_ref, atol=1e-5), "y_pred mismatch"

    print("KERNEL_OK")
</pallas_src>

<mosaic_0001>
module attributes {stable_mosaic.version = 11 : i64} {
  func.func @_self_opt_seq_kernel(%arg0: i32, %arg1: memref<128x32xf32, #tpu.memory_space<vmem>>, %arg2: memref<32x32xf32, #tpu.memory_space<vmem>>, %arg3: memref<1x32xf32, #tpu.memory_space<vmem>>, %arg4: memref<32x128xf32, #tpu.memory_space<vmem>>, %arg5: memref<1x128xf32, #tpu.memory_space<vmem>>, %arg6: memref<128x256xf32, #tpu.memory_space<vmem>>) attributes {dimension_semantics = [#tpu.dimension_semantics<parallel>], iteration_bounds = array<i64: 1>, scalar_prefetch = 0 : i64, scratch_operands = 0 : i64, tpu.core_type = #tpu.core_type<tc>, window_params = [{transform_indices = @transform_0, window_bounds = array<i64: 128, 32>}, {pipeline_mode = #tpu.pipeline_mode<synchronous>, transform_indices = @transform_1, window_bounds = array<i64: 32, 32>}, {pipeline_mode = #tpu.pipeline_mode<synchronous>, transform_indices = @transform_2, window_bounds = array<i64: 1, 32>}, {pipeline_mode = #tpu.pipeline_mode<synchronous>, transform_indices = @transform_3, window_bounds = array<i64: 32, 128>}, {pipeline_mode = #tpu.pipeline_mode<synchronous>, transform_indices = @transform_4, window_bounds = array<i64: 1, 128>}, {transform_indices = @transform_5, window_bounds = array<i64: 128, 256>}]} {
    %c0 = arith.constant 0 : index
    %c0_0 = arith.constant 0 : index
    %0 = vector.load %arg1[%c0, %c0_0] : memref<128x32xf32, #tpu.memory_space<vmem>>, vector<128x32xf32>
    %c0_1 = arith.constant 0 : index
    %c0_2 = arith.constant 0 : index
    %1 = vector.load %arg2[%c0_1, %c0_2] : memref<32x32xf32, #tpu.memory_space<vmem>>, vector<32x32xf32>
    %cst = arith.constant dense<0.000000e+00> : vector<128x32xf32>
    %2 = tpu.matmul %0, %1, %cst {dimension_numbers = #tpu.dot_dimension_numbers<[1], [0], [0], [1], [0, 0, 1, 1], [], []>} : vector<128x32xf32>, vector<32x32xf32>, vector<128x32xf32> -> vector<128x32xf32>
    %c0_3 = arith.constant 0 : index
    %c0_4 = arith.constant 0 : index
    %3 = vector.load %arg3[%c0_3, %c0_4] : memref<1x32xf32, #tpu.memory_space<vmem>>, vector<1x32xf32>
    %4 = vector.broadcast %3 : vector<1x32xf32> to vector<128x32xf32>
    %5 = arith.addf %2, %4 : vector<128x32xf32>
    %cst_5 = arith.constant 0.000000e+00 : f32
    %6 = vector.broadcast %cst_5 : f32 to vector<128x32xf32>
    %7 = arith.maximumf %5, %6 : vector<128x32xf32>
    %c0_6 = arith.constant 0 : index
    %c0_7 = arith.constant 0 : index
    %8 = vector.load %arg4[%c0_6, %c0_7] : memref<32x128xf32, #tpu.memory_space<vmem>>, vector<32x128xf32>
    %cst_8 = arith.constant dense<0.000000e+00> : vector<128x128xf32>
    %9 = tpu.matmul %7, %8, %cst_8 {dimension_numbers = #tpu.dot_dimension_numbers<[1], [0], [0], [1], [0, 0, 1, 1], [], []>} : vector<128x32xf32>, vector<32x128xf32>, vector<128x128xf32> -> vector<128x128xf32>
    %c0_9 = arith.constant 0 : index
    %c0_10 = arith.constant 0 : index
    %10 = vector.load %arg5[%c0_9, %c0_10] : memref<1x128xf32, #tpu.memory_space<vmem>>, vector<1x128xf32>
    %11 = vector.broadcast %10 : vector<1x128xf32> to vector<128x128xf32>
    %12 = arith.addf %9, %11 : vector<128x128xf32>
    %cst_11 = arith.constant 9.99999997E-7 : f32
    %13 = vector.broadcast %cst_11 : f32 to vector<128x128xf32>
    %14 = arith.subf %12, %13 : vector<128x128xf32>
    %15 = arith.negf %14 : vector<128x128xf32>
    %16 = math.exp %15 : vector<128x128xf32>
    %cst_12 = arith.constant 1.000000e+00 : f32
    %17 = vector.broadcast %cst_12 : f32 to vector<128x128xf32>
    %18 = arith.addf %17, %16 : vector<128x128xf32>
    %19 = arith.divf %17, %18 : vector<128x128xf32>
    %c0_13 = arith.constant 0 : index
    %c0_14 = arith.constant 0 : index
    %20 = vector.load %arg6[%c0_13, %c0_14] : memref<128x256xf32, #tpu.memory_space<vmem>>, vector<128x128xf32>
    tpu.vector_store %arg6[%c0_13, %c0_14], %19 {strides = array<i32>} : memref<128x256xf32, #tpu.memory_space<vmem>>, vector<128x128xf32>,
    %c0_15 = arith.constant 0 : index
    %c128 = arith.constant 128 : index
    %21 = vector.load %arg6[%c0_15, %c128] : memref<128x256xf32, #tpu.memory_space<vmem>>, vector<128x128xf32>
    tpu.vector_store %arg6[%c0_15, %c128], %12 {strides = array<i32>} : memref<128x256xf32, #tpu.memory_space<vmem>>, vector<128x128xf32>,
    return
  }
  func.func @transform_0(%arg0: i32) -> (i32, i32) {
    %c0_i32 = arith.constant 0 : i32
    %c0_i32_0 = arith.constant 0 : i32
    return %arg0, %c0_i32 : i32, i32
  }
  func.func @transform_1(%arg0: i32) -> (i32, i32) {
    %c0_i32 = arith.constant 0 : i32
    %c0_i32_0 = arith.constant 0 : i32
    %c0_i32_1 = arith.constant 0 : i32
    return %c0_i32, %c0_i32_0 : i32, i32
  }
  func.func @transform_2(%arg0: i32) -> (i32, i32) {
    %c0_i32 = arith.constant 0 : i32
    %c0_i32_0 = arith.constant 0 : i32
    %c0_i32_1 = arith.constant 0 : i32
    return %c0_i32, %c0_i32_0 : i32, i32
  }
  func.func @transform_3(%arg0: i32) -> (i32, i32) {
    %c0_i32 = arith.constant 0 : i32
    %c0_i32_0 = arith.constant 0 : i32
    %c0_i32_1 = arith.constant 0 : i32
    return %c0_i32, %c0_i32_0 : i32, i32
  }
  func.func @transform_4(%arg0: i32) -> (i32, i32) {
    %c0_i32 = arith.constant 0 : i32
    %c0_i32_0 = arith.constant 0 : i32
    %c0_i32_1 = arith.constant 0 : i32
    return %c0_i32, %c0_i32_0 : i32, i32
  }
  func.func @transform_5(%arg0: i32) -> (i32, i32) {
    %c0_i32 = arith.constant 0 : i32
    %c0_i32_0 = arith.constant 0 : i32
    return %arg0, %c0_i32 : i32, i32
  }
}

</mosaic_0001>

<llo_original>
// kernel: self_optimizing_sequential_forward.1
$region0: #{self_optimizing_sequential_forward.1}
  #allocation0 [shape = 'u32[]', space=smem, size = 0x4, offset = 0x4, fixed_abs, tag = 'smem constant byte address 0x4 - core index']
  #allocation1 [shape = 'u32[72,128]{1,0:T(1,128)}', space=vmem, size = 0x9000, scoped, tag = 'internal scratch']
  %s0 = inlined_call_operand.vmem [shape: f32[128,32], index: 0, kind: input, shape index: {}]
  %s1 = inlined_call_operand.vmem [shape: f32[32,32], index: 1, kind: input, shape index: {}]
  %s2 = inlined_call_operand.vmem [shape: f32[1,32], index: 2, kind: input, shape index: {}]
  %s3 = inlined_call_operand.vmem [shape: f32[32,128], index: 3, kind: input, shape index: {}]
  %s4 = inlined_call_operand.vmem [shape: f32[1,128], index: 4, kind: input, shape index: {}]
  %s5 = inlined_call_operand.vmem [shape: f32[128,256], index: 5, kind: output, shape index: {}]
  %s6 = sld [smem:[#allocation0]]
  $region30: #{self_optimizing_sequential_forward.1} parent=0
    _
  %s8 = ssub.s32 1, %s6
  %s9 = scalar_select 0, %s8, %s6
  // Predicated region
  $region2: #{self_optimizing_sequential_forward.1} parent=0 // pred_check
    _
  $region3: #{self_optimizing_sequential_forward.1} parent=0 // pred_check_branch
    %11 = sbr.rel (0) target = $region5
  $region4: #{self_optimizing_sequential_forward.1} parent=0 // pred_region
    _
  $region5: #{self_optimizing_sequential_forward.1} parent=0 // pred_fallthru
    _
  // Predicated region
  $region6: #{self_optimizing_sequential_forward.1} parent=0 // pred_check
    _
  $region7: #{self_optimizing_sequential_forward.1} parent=0 // pred_check_branch
    %13 = sbr.rel (0) target = $region9
  $region8: #{self_optimizing_sequential_forward.1} parent=0 // pred_region
    _
  $region9: #{self_optimizing_sequential_forward.1} parent=0 // pred_fallthru
    _
  // Predicated region
  $region10: #{self_optimizing_sequential_forward.1} parent=0 // pred_check
    _
  $region11: #{self_optimizing_sequential_forward.1} parent=0 // pred_check_branch
    %15 = sbr.rel (0) target = $region13
  $region12: #{self_optimizing_sequential_forward.1} parent=0 // pred_region
    _
  $region13: #{self_optimizing_sequential_forward.1} parent=0 // pred_fallthru
    _
  // Predicated region
  $region14: #{self_optimizing_sequential_forward.1} parent=0 // pred_check
    _
  $region15: #{self_optimizing_sequential_forward.1} parent=0 // pred_check_branch
    %17 = sbr.rel (0) target = $region17
  $region16: #{self_optimizing_sequential_forward.1} parent=0 // pred_region
    _
  $region17: #{self_optimizing_sequential_forward.1} parent=0 // pred_fallthru
    _
  // Predicated region
  $region18: #{self_optimizing_sequential_forward.1} parent=0 // pred_check
    _
  $region19: #{self_optimizing_sequential_forward.1} parent=0 // pred_check_branch
    %19 = sbr.rel (0) target = $region21
  $region20: #{self_optimizing_sequential_forward.1} parent=0 // pred_region
    _
  $region21: #{self_optimizing_sequential_forward.1} parent=0 // pred_fallthru
    _
  %v20 = vld [vmem:[%s0] sm:$0xff]
  %v21 = vld [vmem:[%s0 + $0x8] sm:$0xff]
  %v22 = vld [vmem:[%s0 + $0x10] sm:$0xff]
  %v23 = vld [vmem:[%s0 + $0x18] sm:$0xff]
  %v24 = vld [vmem:[%s0 + $0x20] sm:$0xff]
  %v25 = vld [vmem:[%s0 + $0x28] sm:$0xff]
  %v26 = vld [vmem:[%s0 + $0x30] sm:$0xff]
  %v27 = vld [vmem:[%s0 + $0x38] sm:$0xff]
  %v28 = vld [vmem:[%s0 + $0x40] sm:$0xff]
  %v29 = vld [vmem:[%s0 + $0x48] sm:$0xff]
  %v30 = vld [vmem:[%s0 + $0x50] sm:$0xff]
  %v31 = vld [vmem:[%s0 + $0x58] sm:$0xff]
  %v32 = vld [vmem:[%s0 + $0x60] sm:$0xff]
  %v33 = vld [vmem:[%s0 + $0x68] sm:$0xff]
  %v34 = vld [vmem:[%s0 + $0x70] sm:$0xff]
  %v35 = vld [vmem:[%s0 + $0x78] sm:$0xff]
  %v36 = vld [vmem:[%s1] sm:$0xff]
  %v37 = vld [vmem:[%s1 + $0x8] sm:$0xff]
  %v38 = vld [vmem:[%s1 + $0x10] sm:$0xff]
  %v39 = vld [vmem:[%s1 + $0x18] sm:$0xff]
  %v40 = vld [vmem:[%s2] sm:$0x1]
  %v42 = vperm.slane %v40, 0
  %vm44 = vcmask 261120
  %v46 = vsel %vm44, %v20, 0
  %v49 = vsel %vm44, %v21, 0
  %v52 = vsel %vm44, %v22, 0
  %v55 = vsel %vm44, %v23, 0
  %v58 = vsel %vm44, %v24, 0
  %v61 = vsel %vm44, %v25, 0
  %v64 = vsel %vm44, %v26, 0
  %v67 = vsel %vm44, %v27, 0
  %v70 = vsel %vm44, %v28, 0
  %v73 = vsel %vm44, %v29, 0
  %v76 = vsel %vm44, %v30, 0
  %v79 = vsel %vm44, %v31, 0
  %v82 = vsel %vm44, %v32, 0
  %v85 = vsel %vm44, %v33, 0
  %v88 = vsel %vm44, %v34, 0
  %v91 = vsel %vm44, %v35, 0
  %93 = vmatpush.msra.mxu0 0.0
  %94 = vmatpush.msra.mxu0 0.0
  %95 = vmatpush.msra.mxu0 0.0
  %96 = vmatpush.msra.mxu0 0.0
  %97 = vmatpush.msra.mxu0 0.0
  %98 = vmatpush.msra.mxu0 0.0
  %99 = vmatpush.msra.mxu0 0.0
  %100 = vmatpush.msra.mxu0 0.0
  %101 = vmatpush.msra.mxu0 0.0
  %102 = vmatpush.msra.mxu0 0.0
  %103 = vmatpush.msra.mxu0 0.0
  %104 = vmatpush.msra.mxu0 0.0
  %105 = vmatpush.msra.mxu0 %v39
  %106 = vmatpush.msra.mxu0 %v38
  %107 = vmatpush.msra.mxu0 %v37
  %108 = vmatpush.msra.mxu0 %v36
  %109 = vmatmul.f32.gmra.mxu0 %v46
  %v110 = vpop.f32.mrf.mxu0
  %v111 = vadd.f32 %v42, %v110
  %112 = vmatmul.f32.gmra.mxu0 %v49
  %v113 = vpop.f32.mrf.mxu0
  %v114 = vadd.f32 %v42, %v113
  %115 = vmatmul.f32.gmra.mxu0 %v52
  %v116 = vpop.f32.mrf.mxu0
  %v117 = vadd.f32 %v42, %v116
  %118 = vmatmul.f32.gmra.mxu0 %v55
  %v119 = vpop.f32.mrf.mxu0
  %v120 = vadd.f32 %v42, %v119
  %121 = vmatmul.f32.gmra.mxu0 %v58
  %v122 = vpop.f32.mrf.mxu0
  %v123 = vadd.f32 %v42, %v122
  %124 = vmatmul.f32.gmra.mxu0 %v61
  %v125 = vpop.f32.mrf.mxu0
  %v126 = vadd.f32 %v42, %v125
  %127 = vmatmul.f32.gmra.mxu0 %v64
  %v128 = vpop.f32.mrf.mxu0
  %v129 = vadd.f32 %v42, %v128
  %130 = vmatmul.f32.gmra.mxu0 %v67
  %v131 = vpop.f32.mrf.mxu0
  %v132 = vadd.f32 %v42, %v131
  %133 = vmatmul.f32.gmra.mxu0 %v70
  %v134 = vpop.f32.mrf.mxu0
  %v135 = vadd.f32 %v42, %v134
  %136 = vmatmul.f32.gmra.mxu0 %v73
  %v137 = vpop.f32.mrf.mxu0
  %v138 = vadd.f32 %v42, %v137
  %139 = vmatmul.f32.gmra.mxu0 %v76
  %v140 = vpop.f32.mrf.mxu0
  %v141 = vadd.f32 %v42, %v140
  %142 = vmatmul.f32.gmra.mxu0 %v79
  %v143 = vpop.f32.mrf.mxu0
  %v144 = vadd.f32 %v42, %v143
  %145 = vmatmul.f32.gmra.mxu0 %v82
  %v146 = vpop.f32.mrf.mxu0
  %v147 = vadd.f32 %v42, %v146
  %148 = vmatmul.f32.gmra.mxu0 %v85
  %v149 = vpop.f32.mrf.mxu0
  %v150 = vadd.f32 %v42, %v149
  %151 = vmatmul.f32.gmra.mxu0 %v88
  %v152 = vpop.f32.mrf.mxu0
  %v153 = vadd.f32 %v42, %v152
  %154 = vmatmul.f32.gmra.mxu0 %v91
  %v155 = vpop.f32.mrf.mxu0
  %v156 = vadd.f32 %v42, %v155
  %157 = vdwg.mxu0
  %v158 = vmax.f32 %v111, 0.0
  %v159 = vmax.f32 %v114, 0.0
  %v160 = vmax.f32 %v117, 0.0
  %v161 = vmax.f32 %v120, 0.0
  %v162 = vmax.f32 %v123, 0.0
  %v163 = vmax.f32 %v126, 0.0
  %v164 = vmax.f32 %v129, 0.0
  %v165 = vmax.f32 %v132, 0.0
  %v166 = vmax.f32 %v135, 0.0
  %v167 = vmax.f32 %v138, 0.0
  %v168 = vmax.f32 %v141, 0.0
  %v169 = vmax.f32 %v144, 0.0
  %v170 = vmax.f32 %v147, 0.0
  %v171 = vmax.f32 %v150, 0.0
  %v172 = vmax.f32 %v153, 0.0
  %v173 = vmax.f32 %v156, 0.0
  %v174 = vld [vmem:[%s3] sm:$0xff]
  %v175 = vld [vmem:[%s3 + $0x8] sm:$0xff]
  %v176 = vld [vmem:[%s3 + $0x10] sm:$0xff]
  %v177 = vld [vmem:[%s3 + $0x18] sm:$0xff]
  %v178 = vld [vmem:[%s4] sm:$0x1]
  %v180 = vperm.slane %v178, 0
  %v183 = vsel %vm44, %v158, 0
  %v186 = vsel %vm44, %v159, 0
  %v189 = vsel %vm44, %v160, 0
  %v192 = vsel %vm44, %v161, 0
  %v195 = vsel %vm44, %v162, 0
  %v198 = vsel %vm44, %v163, 0
  %v201 = vsel %vm44, %v164, 0
  %v204 = vsel %vm44, %v165, 0
  %v207 = vsel %vm44, %v166, 0
  %v210 = vsel %vm44, %v167, 0
  %v213 = vsel %vm44, %v168, 0
  %v216 = vsel %vm44, %v169, 0
  %v219 = vsel %vm44, %v170, 0
  %v222 = vsel %vm44, %v171, 0
  %v225 = vsel %vm44, %v172, 0
  %v228 = vsel %vm44, %v173, 0
  %230 = vmatpush.msra.mxu0 0.0
  %231 = vmatpush.msra.mxu0 0.0
  %232 = vmatpush.msra.mxu0 0.0
  %233 = vmatpush.msra.mxu0 0.0
  %234 = vmatpush.msra.mxu0 0.0
  %235 = vmatpush.msra.mxu0 0.0
  %236 = vmatpush.msra.mxu0 0.0
  %237 = vmatpush.msra.mxu0 0.0
  %238 = vmatpush.msra.mxu0 0.0
  %239 = vmatpush.msra.mxu0 0.0
  %240 = vmatpush.msra.mxu0 0.0
  %241 = vmatpush.msra.mxu0 0.0
  %242 = vmatpush.msra.mxu0 %v177
  %243 = vmatpush.msra.mxu0 %v176
  %244 = vmatpush.msra.mxu0 %v175
  %245 = vmatpush.msra.mxu0 %v174
  %246 = vmatmul.f32.gmra.mxu0 %v183
  %v247 = vpop.f32.mrf.mxu0
  %v248 = vadd.f32 %v180, %v247
  %249 = vmatmul.f32.gmra.mxu0 %v186
  %v250 = vpop.f32.mrf.mxu0
  %v251 = vadd.f32 %v180, %v250
  %252 = vmatmul.f32.gmra.mxu0 %v189
  %v253 = vpop.f32.mrf.mxu0
  %v254 = vadd.f32 %v180, %v253
  %255 = vmatmul.f32.gmra.mxu0 %v192
  %v256 = vpop.f32.mrf.mxu0
  %v257 = vadd.f32 %v180, %v256
  %258 = vmatmul.f32.gmra.mxu0 %v195
  %v259 = vpop.f32.mrf.mxu0
  %v260 = vadd.f32 %v180, %v259
  %261 = vmatmul.f32.gmra.mxu0 %v198
  %v262 = vpop.f32.mrf.mxu0
  %v263 = vadd.f32 %v180, %v262
  %264 = vmatmul.f32.gmra.mxu0 %v201
  %v265 = vpop.f32.mrf.mxu0
  %v266 = vadd.f32 %v180, %v265
  %267 = vmatmul.f32.gmra.mxu0 %v204
  %v268 = vpop.f32.mrf.mxu0
  %v269 = vadd.f32 %v180, %v268
  %270 = vmatmul.f32.gmra.mxu0 %v207
  %v271 = vpop.f32.mrf.mxu0
  %v272 = vadd.f32 %v180, %v271
  %273 = vmatmul.f32.gmra.mxu0 %v210
  %v274 = vpop.f32.mrf.mxu0
  %v275 = vadd.f32 %v180, %v274
  %276 = vmatmul.f32.gmra.mxu0 %v213
  %v277 = vpop.f32.mrf.mxu0
  %v278 = vadd.f32 %v180, %v277
  %279 = vmatmul.f32.gmra.mxu0 %v216
  %v280 = vpop.f32.mrf.mxu0
  %v281 = vadd.f32 %v180, %v280
  %282 = vmatmul.f32.gmra.mxu0 %v219
  %v283 = vpop.f32.mrf.mxu0
  %v284 = vadd.f32 %v180, %v283
  %285 = vmatmul.f32.gmra.mxu0 %v222
  %v286 = vpop.f32.mrf.mxu0
  %v287 = vadd.f32 %v180, %v286
  %288 = vmatmul.f32.gmra.mxu0 %v225
  %v289 = vpop.f32.mrf.mxu0
  %v290 = vadd.f32 %v180, %v289
  %291 = vmatmul.f32.gmra.mxu0 %v228
  %v292 = vpop.f32.mrf.mxu0
  %v293 = vadd.f32 %v180, %v292
  %294 = vdwg.mxu0
  %v295 = vsub.f32 %v248, 1e-06
  %v296 = vsub.f32 %v251, 1e-06
  %v297 = vsub.f32 %v254, 1e-06
  %v298 = vsub.f32 %v257, 1e-06
  %v299 = vsub.f32 %v260, 1e-06
  %v300 = vsub.f32 %v263, 1e-06
  %v301 = vsub.f32 %v266, 1e-06
  %v302 = vsub.f32 %v269, 1e-06
  %v303 = vsub.f32 %v272, 1e-06
  %v304 = vsub.f32 %v275, 1e-06
  %v305 = vsub.f32 %v278, 1e-06
  %v306 = vsub.f32 %v281, 1e-06
  %v307 = vsub.f32 %v284, 1e-06
  %v308 = vsub.f32 %v287, 1e-06
  %v309 = vsub.f32 %v290, 1e-06
  %v310 = vsub.f32 %v293, 1e-06
  %v311 = vxor.u32 %v295, 2147483648
  %v312 = vxor.u32 %v296, 2147483648
  %v313 = vxor.u32 %v297, 2147483648
  %v314 = vxor.u32 %v298, 2147483648
  %v315 = vxor.u32 %v299, 2147483648
  %v316 = vxor.u32 %v300, 2147483648
  %v317 = vxor.u32 %v301, 2147483648
  %v318 = vxor.u32 %v302, 2147483648
  %v319 = vxor.u32 %v303, 2147483648
  %v320 = vxor.u32 %v304, 2147483648
  %v321 = vxor.u32 %v305, 2147483648
  %v322 = vxor.u32 %v306, 2147483648
  %v323 = vxor.u32 %v307, 2147483648
  %v324 = vxor.u32 %v308, 2147483648
  %v325 = vxor.u32 %v309, 2147483648
  %v326 = vxor.u32 %v310, 2147483648
  %v327 = vmul.f32 %v311, 1.442695
  %v328 = vpow.pop %v327
  %v329 = vmul.f32 %v312, 1.442695
  %v330 = vpow.pop %v329
  %v331 = vmul.f32 %v313, 1.442695
  %v332 = vpow.pop %v331
  %v333 = vmul.f32 %v314, 1.442695
  %v334 = vpow.pop %v333
  %v335 = vmul.f32 %v315, 1.442695
  %v336 = vpow.pop %v335
  %v337 = vmul.f32 %v316, 1.442695
  %v338 = vpow.pop %v337
  %v339 = vmul.f32 %v317, 1.442695
  %v340 = vpow.pop %v339
  %v341 = vmul.f32 %v318, 1.442695
  %v342 = vpow.pop %v341
  %v343 = vmul.f32 %v319, 1.442695
  %v344 = vpow.pop %v343
  %v345 = vmul.f32 %v320, 1.442695
  %v346 = vpow.pop %v345
  %v347 = vmul.f32 %v321, 1.442695
  %v348 = vpow.pop %v347
  %v349 = vmul.f32 %v322, 1.442695
  %v350 = vpow.pop %v349
  %v351 = vmul.f32 %v323, 1.442695
  %v352 = vpow.pop %v351
  %v353 = vmul.f32 %v324, 1.442695
  %v354 = vpow.pop %v353
  %v355 = vmul.f32 %v325, 1.442695
  %v356 = vpow.pop %v355
  %v357 = vmul.f32 %v326, 1.442695
  %v358 = vpow.pop %v357
  %v359 = vadd.f32 %v328, 1.0
  %v360 = vadd.f32 %v330, 1.0
  %v361 = vadd.f32 %v332, 1.0
  %v362 = vadd.f32 %v334, 1.0
  %v363 = vadd.f32 %v336, 1.0
  %v364 = vadd.f32 %v338, 1.0
  %v365 = vadd.f32 %v340, 1.0
  %v366 = vadd.f32 %v342, 1.0
  %v367 = vadd.f32 %v344, 1.0
  %v368 = vadd.f32 %v346, 1.0
  %v369 = vadd.f32 %v348, 1.0
  %v370 = vadd.f32 %v350, 1.0
  %v371 = vadd.f32 %v352, 1.0
  %v372 = vadd.f32 %v354, 1.0
  %v373 = vadd.f32 %v356, 1.0
  %v374 = vadd.f32 %v358, 1.0
  %v375 = vrcp.pop %v359
  %v376 = vmul.f32 %v359, %v375
  %v377 = vsub.f32 1.0, %v376
  %v378 = vmul.f32 %v375, %v377
  %v379 = vadd.f32 %v375, %v378
  %vm380 = vweird.f32 %v359
  %vm381 = vweird.f32 %v375
  %vm382 = vmor %vm380, %vm381
  %v383 = vsel %vm382, %v375, %v379
  %v384 = vand.u32 2147483647, %v359
  %vm385 = vcmp.eq.f32.partialorder %v384, 8.507059e+37
  %v386 = vand.u32 %v359, 2147483648
  %v387 = vor.u32 1.1754944e-38, %v386
  %v388 = vsel %vm385, %v387, %v383
  %v389 = vmul.f32 1.0, %v388
  %v390 = vrcp.pop %v360
  %v391 = vmul.f32 %v360, %v390
  %v392 = vsub.f32 1.0, %v391
  %v393 = vmul.f32 %v390, %v392
  %v394 = vadd.f32 %v390, %v393
  %vm395 = vweird.f32 %v360
  %vm396 = vweird.f32 %v390
  %vm397 = vmor %vm395, %vm396
  %v398 = vsel %vm397, %v390, %v394
  %v399 = vand.u32 2147483647, %v360
  %vm400 = vcmp.eq.f32.partialorder %v399, 8.507059e+37
  %v401 = vand.u32 %v360, 2147483648
  %v402 = vor.u32 1.1754944e-38, %v401
  %v403 = vsel %vm400, %v402, %v398
  %v404 = vmul.f32 1.0, %v403
  %v405 = vrcp.pop %v361
  %v406 = vmul.f32 %v361, %v405
  %v407 = vsub.f32 1.0, %v406
  %v408 = vmul.f32 %v405, %v407
  %v409 = vadd.f32 %v405, %v408
  %vm410 = vweird.f32 %v361
  %vm411 = vweird.f32 %v405
  %vm412 = vmor %vm410, %vm411
  %v413 = vsel %vm412, %v405, %v409
  %v414 = vand.u32 2147483647, %v361
  %vm415 = vcmp.eq.f32.partialorder %v414, 8.507059e+37
  %v416 = vand.u32 %v361, 2147483648
  %v417 = vor.u32 1.1754944e-38, %v416
  %v418 = vsel %vm415, %v417, %v413
  %v419 = vmul.f32 1.0, %v418
  %v420 = vrcp.pop %v362
  %v421 = vmul.f32 %v362, %v420
  %v422 = vsub.f32 1.0, %v421
  %v423 = vmul.f32 %v420, %v422
  %v424 = vadd.f32 %v420, %v423
  %vm425 = vweird.f32 %v362
  %vm426 = vweird.f32 %v420
  %vm427 = vmor %vm425, %vm426
  %v428 = vsel %vm427, %v420, %v424
  %v429 = vand.u32 2147483647, %v362
  %vm430 = vcmp.eq.f32.partialorder %v429, 8.507059e+37
  %v431 = vand.u32 %v362, 2147483648
  %v432 = vor.u32 1.1754944e-38, %v431
  %v433 = vsel %vm430, %v432, %v428
  %v434 = vmul.f32 1.0, %v433
  %v435 = vrcp.pop %v363
  %v436 = vmul.f32 %v363, %v435
  %v437 = vsub.f32 1.0, %v436
  %v438 = vmul.f32 %v435, %v437
  %v439 = vadd.f32 %v435, %v438
  %vm440 = vweird.f32 %v363
  %vm441 = vweird.f32 %v435
  %vm442 = vmor %vm440, %vm441
  %v443 = vsel %vm442, %v435, %v439
  %v444 = vand.u32 2147483647, %v363
  %vm445 = vcmp.eq.f32.partialorder %v444, 8.507059e+37
  %v446 = vand.u32 %v363, 2147483648
  %v447 = vor.u32 1.1754944e-38, %v446
  %v448 = vsel %vm445, %v447, %v443
  %v449 = vmul.f32 1.0, %v448
  %v450 = vrcp.pop %v364
  %v451 = vmul.f32 %v364, %v450
  %v452 = vsub.f32 1.0, %v451
  %v453 = vmul.f32 %v450, %v452
  %v454 = vadd.f32 %v450, %v453
  %vm455 = vweird.f32 %v364
  %vm456 = vweird.f32 %v450
  %vm457 = vmor %vm455, %vm456
  %v458 = vsel %vm457, %v450, %v454
  %v459 = vand.u32 2147483647, %v364
  %vm460 = vcmp.eq.f32.partialorder %v459, 8.507059e+37
  %v461 = vand.u32 %v364, 2147483648
  %v462 = vor.u32 1.1754944e-38, %v461
  %v463 = vsel %vm460, %v462, %v458
  %v464 = vmul.f32 1.0, %v463
  %v465 = vrcp.pop %v365
  %v466 = vmul.f32 %v365, %v465
  %v467 = vsub.f32 1.0, %v466
  %v468 = vmul.f32 %v465, %v467
  %v469 = vadd.f32 %v465, %v468
  %vm470 = vweird.f32 %v365
  %vm471 = vweird.f32 %v465
  %vm472 = vmor %vm470, %vm471
  %v473 = vsel %vm472, %v465, %v469
  %v474 = vand.u32 2147483647, %v365
  %vm475 = vcmp.eq.f32.partialorder %v474, 8.507059e+37
  %v476 = vand.u32 %v365, 2147483648
  %v477 = vor.u32 1.1754944e-38, %v476
  %v478 = vsel %vm475, %v477, %v473
  %v479 = vmul.f32 1.0, %v478
  %v480 = vrcp.pop %v366
  %v481 = vmul.f32 %v366, %v480
  %v482 = vsub.f32 1.0, %v481
  %v483 = vmul.f32 %v480, %v482
  %v484 = vadd.f32 %v480, %v483
  %vm485 = vweird.f32 %v366
  %vm486 = vweird.f32 %v480
  %vm487 = vmor %vm485, %vm486
  %v488 = vsel %vm487, %v480, %v484
  %v489 = vand.u32 2147483647, %v366
  %vm490 = vcmp.eq.f32.partialorder %v489, 8.507059e+37
  %v491 = vand.u32 %v366, 2147483648
  %v492 = vor.u32 1.1754944e-38, %v491
  %v493 = vsel %vm490, %v492, %v488
  %v494 = vmul.f32 1.0, %v493
  %v495 = vrcp.pop %v367
  %v496 = vmul.f32 %v367, %v495
  %v497 = vsub.f32 1.0, %v496
  %v498 = vmul.f32 %v495, %v497
  %v499 = vadd.f32 %v495, %v498
  %vm500 = vweird.f32 %v367
  %vm501 = vweird.f32 %v495
  %vm502 = vmor %vm500, %vm501
  %v503 = vsel %vm502, %v495, %v499
  %v504 = vand.u32 2147483647, %v367
  %vm505 = vcmp.eq.f32.partialorder %v504, 8.507059e+37
  %v506 = vand.u32 %v367, 2147483648
  %v507 = vor.u32 1.1754944e-38, %v506
  %v508 = vsel %vm505, %v507, %v503
  %v509 = vmul.f32 1.0, %v508
  %v510 = vrcp.pop %v368
  %v511 = vmul.f32 %v368, %v510
  %v512 = vsub.f32 1.0, %v511
  %v513 = vmul.f32 %v510, %v512
  %v514 = vadd.f32 %v510, %v513
  %vm515 = vweird.f32 %v368
  %vm516 = vweird.f32 %v510
  %vm517 = vmor %vm515, %vm516
  %v518 = vsel %vm517, %v510, %v514
  %v519 = vand.u32 2147483647, %v368
  %vm520 = vcmp.eq.f32.partialorder %v519, 8.507059e+37
  %v521 = vand.u32 %v368, 2147483648
  %v522 = vor.u32 1.1754944e-38, %v521
  %v523 = vsel %vm520, %v522, %v518
  %v524 = vmul.f32 1.0, %v523
  %v525 = vrcp.pop %v369
  %v526 = vmul.f32 %v369, %v525
  %v527 = vsub.f32 1.0, %v526
  %v528 = vmul.f32 %v525, %v527
  %v529 = vadd.f32 %v525, %v528
  %vm530 = vweird.f32 %v369
  %vm531 = vweird.f32 %v525
  %vm532 = vmor %vm530, %vm531
  %v533 = vsel %vm532, %v525, %v529
  %v534 = vand.u32 2147483647, %v369
  %vm535 = vcmp.eq.f32.partialorder %v534, 8.507059e+37
  %v536 = vand.u32 %v369, 2147483648
  %v537 = vor.u32 1.1754944e-38, %v536
  %v538 = vsel %vm535, %v537, %v533
  %v539 = vmul.f32 1.0, %v538
  %v540 = vrcp.pop %v370
  %v541 = vmul.f32 %v370, %v540
  %v542 = vsub.f32 1.0, %v541
  %v543 = vmul.f32 %v540, %v542
  %v544 = vadd.f32 %v540, %v543
  %vm545 = vweird.f32 %v370
  %vm546 = vweird.f32 %v540
  %vm547 = vmor %vm545, %vm546
  %v548 = vsel %vm547, %v540, %v544
  %v549 = vand.u32 2147483647, %v370
  %vm550 = vcmp.eq.f32.partialorder %v549, 8.507059e+37
  %v551 = vand.u32 %v370, 2147483648
  %v552 = vor.u32 1.1754944e-38, %v551
  %v553 = vsel %vm550, %v552, %v548
  %v554 = vmul.f32 1.0, %v553
  %v555 = vrcp.pop %v371
  %v556 = vmul.f32 %v371, %v555
  %v557 = vsub.f32 1.0, %v556
  %v558 = vmul.f32 %v555, %v557
  %v559 = vadd.f32 %v555, %v558
  %vm560 = vweird.f32 %v371
  %vm561 = vweird.f32 %v555
  %vm562 = vmor %vm560, %vm561
  %v563 = vsel %vm562, %v555, %v559
  %v564 = vand.u32 2147483647, %v371
  %vm565 = vcmp.eq.f32.partialorder %v564, 8.507059e+37
  %v566 = vand.u32 %v371, 2147483648
  %v567 = vor.u32 1.1754944e-38, %v566
  %v568 = vsel %vm565, %v567, %v563
  %v569 = vmul.f32 1.0, %v568
  %v570 = vrcp.pop %v372
  %v571 = vmul.f32 %v372, %v570
  %v572 = vsub.f32 1.0, %v571
  %v573 = vmul.f32 %v570, %v572
  %v574 = vadd.f32 %v570, %v573
  %vm575 = vweird.f32 %v372
  %vm576 = vweird.f32 %v570
  %vm577 = vmor %vm575, %vm576
  %v578 = vsel %vm577, %v570, %v574
  %v579 = vand.u32 2147483647, %v372
  %vm580 = vcmp.eq.f32.partialorder %v579, 8.507059e+37
  %v581 = vand.u32 %v372, 2147483648
  %v582 = vor.u32 1.1754944e-38, %v581
  %v583 = vsel %vm580, %v582, %v578
  %v584 = vmul.f32 1.0, %v583
  %v585 = vrcp.pop %v373
  %v586 = vmul.f32 %v373, %v585
  %v587 = vsub.f32 1.0, %v586
  %v588 = vmul.f32 %v585, %v587
  %v589 = vadd.f32 %v585, %v588
  %vm590 = vweird.f32 %v373
  %vm591 = vweird.f32 %v585
  %vm592 = vmor %vm590, %vm591
  %v593 = vsel %vm592, %v585, %v589
  %v594 = vand.u32 2147483647, %v373
  %vm595 = vcmp.eq.f32.partialorder %v594, 8.507059e+37
  %v596 = vand.u32 %v373, 2147483648
  %v597 = vor.u32 1.1754944e-38, %v596
  %v598 = vsel %vm595, %v597, %v593
  %v599 = vmul.f32 1.0, %v598
  %v600 = vrcp.pop %v374
  %v601 = vmul.f32 %v374, %v600
  %v602 = vsub.f32 1.0, %v601
  %v603 = vmul.f32 %v600, %v602
  %v604 = vadd.f32 %v600, %v603
  %vm605 = vweird.f32 %v374
  %vm606 = vweird.f32 %v600
  %vm607 = vmor %vm605, %vm606
  %v608 = vsel %vm607, %v600, %v604
  %v609 = vand.u32 2147483647, %v374
  %vm610 = vcmp.eq.f32.partialorder %v609, 8.507059e+37
  %v611 = vand.u32 %v374, 2147483648
  %v612 = vor.u32 1.1754944e-38, %v611
  %v613 = vsel %vm610, %v612, %v608
  %v614 = vmul.f32 1.0, %v613
  %615 = vst [vmem:[%s5] sm:$0xff] %v389
  %616 = vst [vmem:[%s5 + $0x10] sm:$0xff] %v404
  %617 = vst [vmem:[%s5 + $0x20] sm:$0xff] %v419
  %618 = vst [vmem:[%s5 + $0x30] sm:$0xff] %v434
  %619 = vst [vmem:[%s5 + $0x40] sm:$0xff] %v449
  %620 = vst [vmem:[%s5 + $0x50] sm:$0xff] %v464
  %621 = vst [vmem:[%s5 + $0x60] sm:$0xff] %v479
  %622 = vst [vmem:[%s5 + $0x70] sm:$0xff] %v494
  %623 = vst [vmem:[%s5 + $0x80] sm:$0xff] %v509
  %624 = vst [vmem:[%s5 + $0x90] sm:$0xff] %v524
  %625 = vst [vmem:[%s5 + $0xa0] sm:$0xff] %v539
  %626 = vst [vmem:[%s5 + $0xb0] sm:$0xff] %v554
  %627 = vst [vmem:[%s5 + $0xc0] sm:$0xff] %v569
  %628 = vst [vmem:[%s5 + $0xd0] sm:$0xff] %v584
  %629 = vst [vmem:[%s5 + $0xe0] sm:$0xff] %v599
  %630 = vst [vmem:[%s5 + $0xf0] sm:$0xff] %v614
  %631 = vst [vmem:[%s5 + $0x8] sm:$0xff] %v248
  %632 = vst [vmem:[%s5 + $0x18] sm:$0xff] %v251
  %633 = vst [vmem:[%s5 + $0x28] sm:$0xff] %v254
  %634 = vst [vmem:[%s5 + $0x38] sm:$0xff] %v257
  %635 = vst [vmem:[%s5 + $0x48] sm:$0xff] %v260
  %636 = vst [vmem:[%s5 + $0x58] sm:$0xff] %v263
  %637 = vst [vmem:[%s5 + $0x68] sm:$0xff] %v266
  %638 = vst [vmem:[%s5 + $0x78] sm:$0xff] %v269
  %639 = vst [vmem:[%s5 + $0x88] sm:$0xff] %v272
  %640 = vst [vmem:[%s5 + $0x98] sm:$0xff] %v275
  %641 = vst [vmem:[%s5 + $0xa8] sm:$0xff] %v278
  %642 = vst [vmem:[%s5 + $0xb8] sm:$0xff] %v281
  %643 = vst [vmem:[%s5 + $0xc8] sm:$0xff] %v284
  %644 = vst [vmem:[%s5 + $0xd8] sm:$0xff] %v287
  %645 = vst [vmem:[%s5 + $0xe8] sm:$0xff] %v290
  %646 = vst [vmem:[%s5 + $0xf8] sm:$0xff] %v293
  // Predicated region
  $region22: #{self_optimizing_sequential_forward.1} parent=0 // pred_check
    _
  $region23: #{self_optimizing_sequential_forward.1} parent=0 // pred_check_branch
    %648 = sbr.rel (0) target = $region25
  $region24: #{self_optimizing_sequential_forward.1} parent=0 // pred_region
    _
  $region25: #{self_optimizing_sequential_forward.1} parent=0 // pred_fallthru
    _
  // Predicated region
  $region26: #{self_optimizing_sequential_forward.1} parent=0 // pred_check
    _
  $region27: #{self_optimizing_sequential_forward.1} parent=0 // pred_check_branch
    %650 = sbr.rel (0) target = $region29
  $region28: #{self_optimizing_sequential_forward.1} parent=0 // pred_region
    _
  $region29: #{self_optimizing_sequential_forward.1} parent=0 // pred_fallthru
    _

</llo_original>
